<compile_context>
chip_gen: v6e
topology: v6e:2x2x1
jax: 0.10.0
libtpu: 0.0.40
codegen_flags: <defaults>
</compile_context>

<pallas_src>
import functools

import jax
import jax.numpy as jnp
from jax import lax
from jax.experimental import pallas as pl
from jax.experimental.pallas import tpu as pltpu


def _cdiv(a, b):
    return -(-a // b)


def _round_up(x, m):
    return _cdiv(x, m) * m


def _vmem_capacity_bytes():
    """Per-TensorCore VMEM capacity (v5e/v6e: 128 MiB, v7x: 64 MiB)."""
    try:
        return int(pltpu.get_tpu_info().vmem_capacity_bytes)
    except Exception:
        return 64 * 1024 * 1024  # conservative fallback (v7x per-TC VMEM)


def _pick_tiles(n, d, bpe, vmem_budget):
    """Padding-aware, VMEM-filling tile selection.

    Returns (tm, tn, tk).  tk == n means the whole reduction runs in a single
    step (no K grid axis, no tail masking needed).
    """
    TM_CAP, TN_CAP = 512, 2048

    # Output tiles: size from the tile count under the cap so the edge tile
    # wastes as little as possible.  tn stays a multiple of 128 (lane-dense
    # stores); tm a multiple of 8.
    n_col_tiles = _cdiv(d, TN_CAP)
    tn = min(_round_up(_cdiv(d, n_col_tiles), 128), _round_up(d, 128))
    n_row_tiles = _cdiv(n, TM_CAP)
    tm = min(_round_up(_cdiv(n, n_row_tiles), 8), _round_up(n, 8))

    # v7x megacore: make sure at least one "parallel" grid axis has >= 2 tiles
    # so Mosaic can shard the grid across both TensorCores.
    if _cdiv(n, tm) * _cdiv(d, tn) == 1:
        if d > 128:
            tn = _round_up(_cdiv(d, 2), 128)
        elif n > 8:
            tm = _round_up(_cdiv(n, 2), 8)

    def fits(tm_, tn_, tk_):
        # Double-buffered compute-dtype input tiles + double-buffered f32
        # output tile (already includes the x2 pipelining factor).
        return 2 * bpe * tk_ * (tm_ + tn_) + 2 * 4 * tm_ * tn_ <= vmem_budget

    # Prefer the whole reduction in one step (tk == n is a legal block dim
    # because it equals the full array extent).  Shrink tn, then tm, before
    # giving up on full-K.
    tk = n
    while not fits(tm, tn, tk) and tn > 512:
        tn = _round_up(_cdiv(tn, 2), 128)
    while not fits(tm, tn, tk) and tm > 256:
        tm = _round_up(_cdiv(tm, 2), 8)
    if fits(tm, tn, tk):
        return tm, tn, tk

    # Tiled-K fallback: 128-aligned tk, K tail masked in-kernel.
    tk = min(1024, _round_up(n, 128))
    while not fits(tm, tn, tk) and tk > 128:
        tk = _round_up(_cdiv(tk, 2), 128)
    while not fits(tm, tn, tk) and tn > 128:
        tn = _round_up(_cdiv(tn, 2), 128)
    while not fits(tm, tn, tk) and tm > 8:
        tm = _round_up(_cdiv(tm, 2), 8)
    return tm, tn, tk


def _single_step_kernel(c_ref, x_ref, o_ref):
    """Whole K reduction in one step: direct MXU write, no accumulator RMW."""
    o_ref[...] = jnp.dot(c_ref[...], x_ref[...],
                         preferred_element_type=jnp.float32)


def _make_tiled_k_kernel(n, tk):
    """K tiled on grid axis 2; accumulate into the VMEM-resident f32 output."""
    k_rem = n % tk

    def kernel(c_ref, x_ref, o_ref):
        kk = pl.program_id(2)

        @pl.when(kk == 0)
        def _():
            o_ref[...] = jnp.zeros_like(o_ref)

        c = c_ref[...]
        x = x_ref[...]
        if k_rem != 0:
            # The last K block sticks out past the logical array; its
            # out-of-bounds contents are unspecified (may be NaN/Inf), so zero
            # the tail of both operands on the final reduction step only.
            is_last = kk == pl.num_programs(2) - 1
            valid = jnp.where(is_last, k_rem, tk)
            c = jnp.where(
                lax.broadcasted_iota(jnp.int32, c.shape, 1) < valid, c, 0)
            x = jnp.where(
                lax.broadcasted_iota(jnp.int32, x.shape, 0) < valid, x, 0)

        o_ref[...] += jnp.dot(c, x, preferred_element_type=jnp.float32)

    return kernel


@functools.partial(jax.jit, static_argnames=("compute_dtype",))
def self_expression(coefficient, x, *, compute_dtype=jnp.bfloat16):
    """y = Coefficient @ x as a tiled Pallas TPU matmul.

    coefficient: (n, n) float32 parameter
    x:           (n, d) float32 activations
    compute_dtype: dtype fed to the MXU.  bfloat16 (default, native MXU path,
        f32 accumulation); pass jnp.float32 for bit-faithful f32 semantics.
    """
    n, k = coefficient.shape
    k2, d = x.shape
    assert k == n and k2 == n, "Coefficient must be (n, n) and x must be (n, d)"

    bpe = jnp.dtype(compute_dtype).itemsize
    vmem_budget = int(0.8 * _vmem_capacity_bytes())  # headroom for Mosaic
    tm, tn, tk = _pick_tiles(n, d, bpe, vmem_budget)

    c_in = coefficient.astype(compute_dtype)
    x_in = x.astype(compute_dtype)

    m_tiles = _cdiv(n, tm)
    n_tiles = _cdiv(d, tn)

    if tk >= n:  # full-K single step: no reduction grid axis
        tk = n
        grid = (m_tiles, n_tiles)
        in_specs = [
            pl.BlockSpec((tm, n), lambda i, j: (i, 0)),   # Coefficient panel
            pl.BlockSpec((n, tn), lambda i, j: (0, j)),   # x panel
        ]
        out_spec = pl.BlockSpec((tm, tn), lambda i, j: (i, j))
        kernel = _single_step_kernel
        dim_sem = ("parallel", "parallel")
    else:
        k_tiles = _cdiv(n, tk)
        grid = (m_tiles, n_tiles, k_tiles)
        in_specs = [
            pl.BlockSpec((tm, tk), lambda i, j, kk: (i, kk)),  # Coefficient
            pl.BlockSpec((tk, tn), lambda i, j, kk: (kk, j)),  # x
        ]
        out_spec = pl.BlockSpec((tm, tn), lambda i, j, kk: (i, j))
        kernel = _make_tiled_k_kernel(n, tk)
        dim_sem = ("parallel", "parallel", "arbitrary")

    # Double-buffered footprint (already includes the x2 pipelining factor).
    footprint = 2 * bpe * tk * (tm + tn) + 2 * 4 * tm * tn
    vmem_limit = int(min(vmem_budget, max(footprint + (8 << 20), 32 << 20)))

    cost = pl.CostEstimate(
        flops=2 * n * n * d,
        transcendentals=0,
        bytes_accessed=bpe * (n * n * n_tiles + n * d * m_tiles) + 4 * n * d,
    )

    out = pl.pallas_call(
        kernel,
        out_shape=jax.ShapeDtypeStruct((n, d), jnp.float32),
        grid_spec=pltpu.PrefetchScalarGridSpec(
            num_scalar_prefetch=0,
            grid=grid,
            in_specs=in_specs,
            out_specs=out_spec,
        ),
        compiler_params=pltpu.CompilerParams(
            dimension_semantics=dim_sem,
            vmem_limit_bytes=vmem_limit,
        ),
        cost_estimate=cost,
    )(c_in, x_in)

    return out.astype(x.dtype)


if __name__ == "__main__":
    # Small shapes consistent with the module: n samples, d flattened features.
    n, d = 128, 256

    # Deterministic parameter init, exactly as in __init__:
    # Coefficient = 0.0001 * ones(n, n)
    coefficient = jnp.full((n, n), 1e-4, dtype=jnp.float32)

    key = jax.random.PRNGKey(0)
    x = jax.random.normal(key, (n, d), dtype=jnp.float32)

    # Default (bf16 MXU inputs, f32 accumulation): compare against a
    # precision-matched JAX reference.
    y = jax.block_until_ready(self_expression(coefficient, x))
    y_ref_bf16 = jnp.dot(coefficient.astype(jnp.bfloat16),
                         x.astype(jnp.bfloat16),
                         preferred_element_type=jnp.float32)
    assert y.shape == (n, d)
    assert jnp.allclose(y, y_ref_bf16, atol=1e-5, rtol=1e-3), \
        "bf16 path mismatch vs reference"

    # Exact float32 path (matches the PyTorch module semantics).
    y32 = jax.block_until_ready(
        self_expression(coefficient, x, compute_dtype=jnp.float32))
    y_ref = coefficient @ x
    assert jnp.allclose(y32, y_ref, atol=1e-5, rtol=1e-4), \
        "f32 path mismatch vs reference"

    print("KERNEL_OK")
</pallas_src>

<mosaic_0001>
module attributes {stable_mosaic.version = 11 : i64} {
  func.func @_single_step_kernel(%arg0: i32, %arg1: i32, %arg2: memref<128x128xbf16, #tpu.memory_space<vmem>>, %arg3: memref<128x128xbf16, #tpu.memory_space<vmem>>, %arg4: memref<128x128xf32, #tpu.memory_space<vmem>>) attributes {dimension_semantics = [#tpu.dimension_semantics<parallel>, #tpu.dimension_semantics<parallel>], iteration_bounds = array<i64: 1, 2>, scalar_prefetch = 0 : i64, scratch_operands = 0 : i64, tpu.core_type = #tpu.core_type<tc>, window_params = [{transform_indices = @transform_0, window_bounds = array<i64: 128, 128>}, {transform_indices = @transform_1, window_bounds = array<i64: 128, 128>}, {transform_indices = @transform_2, window_bounds = array<i64: 128, 128>}]} {
    %c0 = arith.constant 0 : index
    %c0_0 = arith.constant 0 : index
    %0 = vector.load %arg2[%c0, %c0_0] : memref<128x128xbf16, #tpu.memory_space<vmem>>, vector<128x128xbf16>
    %c0_1 = arith.constant 0 : index
    %c0_2 = arith.constant 0 : index
    %1 = vector.load %arg3[%c0_1, %c0_2] : memref<128x128xbf16, #tpu.memory_space<vmem>>, vector<128x128xbf16>
    %cst = arith.constant dense<0.000000e+00> : vector<128x128xf32>
    %2 = tpu.matmul %0, %1, %cst {dimension_numbers = #tpu.dot_dimension_numbers<[1], [0], [0], [1], [0, 0, 1, 1], [], []>} : vector<128x128xbf16>, vector<128x128xbf16>, vector<128x128xf32> -> vector<128x128xf32>
    %c0_3 = arith.constant 0 : index
    %c0_4 = arith.constant 0 : index
    %3 = vector.load %arg4[%c0_3, %c0_4] : memref<128x128xf32, #tpu.memory_space<vmem>>, vector<128x128xf32>
    tpu.vector_store %arg4[%c0_3, %c0_4], %2 {strides = array<i32>} : memref<128x128xf32, #tpu.memory_space<vmem>>, vector<128x128xf32>,
    return
  }
  func.func @transform_0(%arg0: i32, %arg1: i32) -> (i32, i32) {
    %c0_i32 = arith.constant 0 : i32
    %c0_i32_0 = arith.constant 0 : i32
    return %arg0, %c0_i32 : i32, i32
  }
  func.func @transform_1(%arg0: i32, %arg1: i32) -> (i32, i32) {
    %c0_i32 = arith.constant 0 : i32
    %c0_i32_0 = arith.constant 0 : i32
    return %c0_i32, %arg1 : i32, i32
  }
  func.func @transform_2(%arg0: i32, %arg1: i32) -> (i32, i32) {
    %c0_i32 = arith.constant 0 : i32
    return %arg0, %arg1 : i32, i32
  }
}

</mosaic_0001>

<llo_original>
// kernel: self_expression.1
$region0: #{self_expression.1}
  #allocation0 [shape = 'u32[]', space=smem, size = 0x4, offset = 0x4, fixed_abs, tag = 'smem constant byte address 0x4 - core index']
  #allocation1 [shape = 'u32[144,128]{1,0:T(1,128)}', space=vmem, size = 0x12000, scoped, tag = 'internal scratch']
  %s0 = inlined_call_operand.vmem [shape: bf16[128,128], index: 0, kind: input, shape index: {}]
  %s1 = inlined_call_operand.vmem [shape: bf16[128,256], index: 1, kind: input, shape index: {}]
  %s2 = inlined_call_operand.hbm [shape: f32[128,256], index: 2, kind: output, shape index: {}]
  %s3 = sld [smem:[#allocation0]]
  $region82: #{self_expression.1} parent=0
    _
  %s5 = ssub.s32 1, %s3
  %s6 = scalar_select 0, %s5, %s3
  $region1: #{self_expression.1} parent=0
    #allocation2 [shape = 'u8[65536]{0}', space=vmem, size = 0x10000, scoped, tag = 'input window, operand 1']
    #allocation3 [shape = 'u8[131072]{0}', space=vmem, size = 0x20000, scoped, tag = 'output window, operand 0']
    #allocation4 [shape = 's32[2]{0}', space=sflag, size = 0x8, scoped, tag = 'scoped memory for self_expression.1']
    %7 = vsyncpa [#allocation4], 0
    %s8 = scalar_lea.sflag [#allocation4], 1
    %9 = vsyncpa %s8, 0
    loop: start=0, step=1, limit=4
    $region2: #{self_expression.1} parent=1 // loop_pre_header
      _
    $region3: #{self_expression.1} parent=1 // loop_header
      %s11 = sphi 0, %s15
      %p12 = scmp.ge.s32.totalorder %s11, 4
      %s18 = sphi 0, %s30
      %s19 = sphi 0, %s26
      %s20 = sphi 0, %s18
      %s21 = sphi 0, %s19
      %s22 = sphi 0, %s20
      %s23 = sphi 0, %s21
      %s33 = sphi 0, %s35
      %s36 = sphi 0, %s33
      %s37 = sphi 0, %s36
      %s53 = sphi 0, %s37
      %s59 = sphi 0, %s61
      %s62 = sphi 0, %s59
      %s63 = sphi 0, %s62
      %s79 = sphi 0, %s63
      %s87 = sphi 0, %s89
      %s90 = sphi 0, %s87
      %s91 = sphi 0, %s90
      %s107 = sphi 0, %s91
    $region4: #{self_expression.1} parent=1 // loop_header_branch
      %14 = sbr.rel (%p12) target = $region8
    $region5: #{self_expression.1} parent=1 // loop_body
      %s16 = ssub.s32 %s11, 1
      %s17 = ssub.s32 %s11, 2
      %s24 = sadd.s32 1, %s19
      %p25 = scmp.ge.s32.totalorder %s24, 2
      %s26 = scalar_select %p25, 0, %s24
      %s27 = sadd.s32 1, %s18
      %s28 = scalar_select %p25, %s27, %s18
      %p29 = scmp.ge.s32.totalorder %s28, 1
      %s30 = scalar_select %p29, 0, %s28
      %s31 = ssub.s32 %s18, %s30
      %p32 = scmp.eq.s32.totalorder %s31, 0
      %s34 = sadd.s32 %s33, 1
      %s35 = scalar_select %p32, %s33, %s34
      %p38 = pneg %p32
      %p39 = scmp.eq.s32.totalorder %s11, 1
      %p40 = por %p38, %p39
      %p41 = scmp.ne.s32.totalorder %s33, %s36
      %p42 = scmp.eq.s32.totalorder %s11, 0
      %p43 = por %p41, %p42
      %p44 = scmp.ne.s32.totalorder %s33, %s36
      %p45 = scmp.eq.s32.totalorder %s16, 1
      %p46 = por %p44, %p45
      %p47 = scmp.ne.s32.totalorder %s36, %s37
      %p48 = scmp.eq.s32.totalorder %s16, 0
      %p49 = por %p47, %p48
      %p50 = scmp.ne.s32.totalorder %s36, %s37
      %p51 = scmp.eq.s32.totalorder %s17, 1
      %p52 = por %p50, %p51
      %p54 = scmp.ne.s32.totalorder %s37, %s53
      %p55 = scmp.eq.s32.totalorder %s17, 0
      %p56 = por %p54, %p55
      %s57 = ssub.s32 %s19, %s26
      %p58 = scmp.eq.s32.totalorder %s57, 0
      %s60 = sadd.s32 %s59, 1
      %s61 = scalar_select %p58, %s59, %s60
      %p64 = pneg %p58
      %p65 = scmp.eq.s32.totalorder %s11, 1
      %p66 = por %p64, %p65
      %p67 = scmp.ne.s32.totalorder %s59, %s62
      %p68 = scmp.eq.s32.totalorder %s11, 0
      %p69 = por %p67, %p68
      %p70 = scmp.ne.s32.totalorder %s59, %s62
      %p71 = scmp.eq.s32.totalorder %s16, 1
      %p72 = por %p70, %p71
      %p73 = scmp.ne.s32.totalorder %s62, %s63
      %p74 = scmp.eq.s32.totalorder %s16, 0
      %p75 = por %p73, %p74
      %p76 = scmp.ne.s32.totalorder %s62, %s63
      %p77 = scmp.eq.s32.totalorder %s17, 1
      %p78 = por %p76, %p77
      %p80 = scmp.ne.s32.totalorder %s63, %s79
      %p81 = scmp.eq.s32.totalorder %s17, 0
      %p82 = por %p80, %p81
      %s83 = ssub.s32 %s18, %s30
      %s84 = ssub.s32 %s19, %s26
      %s85 = sor.u32 %s83, %s84
      %p86 = scmp.eq.s32.totalorder %s85, 0
      %s88 = sadd.s32 %s87, 1
      %s89 = scalar_select %p86, %s87, %s88
      %p92 = pneg %p86
      %p93 = scmp.eq.s32.totalorder %s11, 1
      %p94 = por %p92, %p93
      %p95 = scmp.ne.s32.totalorder %s87, %s90
      %p96 = scmp.eq.s32.totalorder %s11, 0
      %p97 = por %p95, %p96
      %p98 = scmp.ne.s32.totalorder %s87, %s90
      %p99 = scmp.eq.s32.totalorder %s16, 1
      %p100 = por %p98, %p99
      %p101 = scmp.ne.s32.totalorder %s90, %s91
      %p102 = scmp.eq.s32.totalorder %s16, 0
      %p103 = por %p101, %p102
      %p104 = scmp.ne.s32.totalorder %s90, %s91
      %p105 = scmp.eq.s32.totalorder %s17, 1
      %p106 = por %p104, %p105
      %p108 = scmp.ne.s32.totalorder %s91, %s107
      %p109 = scmp.eq.s32.totalorder %s17, 0
      %p110 = por %p108, %p109
      %p111 = scmp.le.s32.totalorder 1, %s11
      %p112 = scmp.lt.s32.totalorder %s11, 3
      %p113 = pnand %p111, %p112
      %p114 = pneg %p113
      // Predicated region
      $region9: #{self_expression.1} parent=5 // pred_check
        _
      $region10: #{self_expression.1} parent=5 // pred_check_branch
        %116 = sbr.rel (%p113) target = $region12
      $region11: #{self_expression.1} parent=5 // pred_region
        %s117 = ssub.s32 %s11, 1
        // Predicated region
        $region13: #{self_expression.1} parent=11 // pred_check
          %p118 = pneg %p49
        $region14: #{self_expression.1} parent=11 // pred_check_branch
          %120 = sbr.rel (%p118) target = $region16
        $region15: #{self_expression.1} parent=11 // pred_region
          %s121 = smul.u32 16, %s20
          %p122 = scmp.lt.s32.totalorder %s121, 15
          %s123 = scalar_select %p122, %s121, 15
          %s124 = smul.addr %s123, 4
          %s125 = scalar_lea.vmem %s0, %s124
          %s126 = smul.u32 16, %s20
        $region16: #{self_expression.1} parent=11 // pred_fallthru
          _
      $region12: #{self_expression.1} parent=5 // pred_fallthru
        _
      %p127 = scmp.lt.s32.totalorder %s11, 2
      // Predicated region
      $region17: #{self_expression.1} parent=5 // pred_check
        %p128 = pneg %p127
      $region18: #{self_expression.1} parent=5 // pred_check_branch
        %130 = sbr.rel (%p128) target = $region20
      $region19: #{self_expression.1} parent=5 // pred_region
        // Predicated region
        $region21: #{self_expression.1} parent=19 // pred_check
          %p131 = pneg %p69
        $region22: #{self_expression.1} parent=19 // pred_check_branch
          %133 = sbr.rel (%p131) target = $region24
        $region23: #{self_expression.1} parent=19 // pred_region
          %s134 = sand.u32 %s59, 1
          %s135 = sand.u32 %s59, 1
          %s136 = smul.addr %s135, 64
          %s137 = scalar_lea.vmem [#allocation2], %s136
          %s138 = smul.addr %s19, 4
          %s139 = scalar_lea.vmem %s1, %s138
          // Predicated region
          $region25: #{self_expression.1} parent=23 // pred_check
            _
          $region26: #{self_expression.1} parent=23 // pred_check_branch
            %141 = sbr.rel (0) target = $region28
          $region27: #{self_expression.1} parent=23 // pred_region
            // Predicated region
            $region29: #{self_expression.1} parent=27 // pred_check
              _
            $region30: #{self_expression.1} parent=27 // pred_check_branch
              %143 = sbr.rel target = $region32
            $region31: #{self_expression.1} parent=27 // pred_region
              // Predicated region
              $region44: #{self_expression.1} parent=31 // pred_check
                _
              $region45: #{self_expression.1} parent=31 // pred_check_branch
                %189 = sbr.rel (0) target = $region47
              $region46: #{self_expression.1} parent=31 // pred_region
                loop: start=0, step=1, limit=1
                $region48: #{self_expression.1} parent=46 // loop_pre_header
                  _
                $region49: #{self_expression.1} parent=46 // loop_header
                  %s191 = sphi 0, %s195
                  %p192 = scmp.ge.s32.totalorder %s191, 1
                  %s196 = sphi %s139, %s139
                  %s197 = sphi %s137, %s137
                $region50: #{self_expression.1} parent=46 // loop_header_branch
                  %194 = sbr.rel (%p192) target = $region54
                $region51: #{self_expression.1} parent=46 // loop_body
                  _
                $region52: #{self_expression.1} parent=46 // loop_footer
                  %s195 = sadd.s32 1, %s191
                $region53: #{self_expression.1} parent=46 // loop_footer_branch
                  %190 = sbr.rel target = $region49
                $region54: #{self_expression.1} parent=46 // loop_exit
                  _
                %s199 = ssub.s32 16, 1
                loop: start=0, step=1, limit=1
                $region55: #{self_expression.1} parent=46 // loop_pre_header
                  _
                $region56: #{self_expression.1} parent=46 // loop_header
                  %s201 = sphi 0, %s205
                  %p202 = scmp.ge.s32.totalorder %s201, 1
                  %s206 = sphi %s139, %s139
                  %s207 = sphi %s137, %s137
                $region57: #{self_expression.1} parent=46 // loop_header_branch
                  %204 = sbr.rel (%p202) target = $region61
                $region58: #{self_expression.1} parent=46 // loop_body
                  %v208 = vld [vmem:[%s206] sm:%s199]
                  %209 = vst [vmem:[%s207] sm:%s199] %v208
                  %v210 = vld [vmem:[%s206 + $0x8] sm:%s199]
                  %211 = vst [vmem:[%s207 + $0x4] sm:%s199] %v210
                  %v212 = vld [vmem:[%s206 + $0x10] sm:%s199]
                  %213 = vst [vmem:[%s207 + $0x8] sm:%s199] %v212
                  %v214 = vld [vmem:[%s206 + $0x18] sm:%s199]
                  %215 = vst [vmem:[%s207 + $0xc] sm:%s199] %v214
                  %v216 = vld [vmem:[%s206 + $0x20] sm:%s199]
                  %217 = vst [vmem:[%s207 + $0x10] sm:%s199] %v216
                  %v218 = vld [vmem:[%s206 + $0x28] sm:%s199]
                  %219 = vst [vmem:[%s207 + $0x14] sm:%s199] %v218
                  %v220 = vld [vmem:[%s206 + $0x30] sm:%s199]
                  %221 = vst [vmem:[%s207 + $0x18] sm:%s199] %v220
                  %v222 = vld [vmem:[%s206 + $0x38] sm:%s199]
                  %223 = vst [vmem:[%s207 + $0x1c] sm:%s199] %v222
                  %v224 = vld [vmem:[%s206 + $0x40] sm:%s199]
                  %225 = vst [vmem:[%s207 + $0x20] sm:%s199] %v224
                  %v226 = vld [vmem:[%s206 + $0x48] sm:%s199]
                  %227 = vst [vmem:[%s207 + $0x24] sm:%s199] %v226
                  %v228 = vld [vmem:[%s206 + $0x50] sm:%s199]
                  %229 = vst [vmem:[%s207 + $0x28] sm:%s199] %v228
                  %v230 = vld [vmem:[%s206 + $0x58] sm:%s199]
                  %231 = vst [vmem:[%s207 + $0x2c] sm:%s199] %v230
                  %v232 = vld [vmem:[%s206 + $0x60] sm:%s199]
                  %233 = vst [vmem:[%s207 + $0x30] sm:%s199] %v232
                  %v234 = vld [vmem:[%s206 + $0x68] sm:%s199]
                  %235 = vst [vmem:[%s207 + $0x34] sm:%s199] %v234
                  %v236 = vld [vmem:[%s206 + $0x70] sm:%s199]
                  %237 = vst [vmem:[%s207 + $0x38] sm:%s199] %v236
                  %v238 = vld [vmem:[%s206 + $0x78] sm:%s199]
                  %239 = vst [vmem:[%s207 + $0x3c] sm:%s199] %v238
                $region59: #{self_expression.1} parent=46 // loop_footer
                  %s205 = sadd.s32 1, %s201
                $region60: #{self_expression.1} parent=46 // loop_footer_branch
                  %200 = sbr.rel target = $region56
                $region61: #{self_expression.1} parent=46 // loop_exit
                  _
              $region47: #{self_expression.1} parent=31 // pred_fallthru
                _
            $region32: #{self_expression.1} parent=27 // pred_fallthru
              _
            // Predicated region
            $region33: #{self_expression.1} parent=27 // pred_check
              _
            $region34: #{self_expression.1} parent=27 // pred_check_branch
              %145 = sbr.rel (0) target = $region36
            $region35: #{self_expression.1} parent=27 // pred_region
              %s147 = ssub.s32 16, 1
              loop: start=0, step=1, limit=1
              $region37: #{self_expression.1} parent=35 // loop_pre_header
                _
              $region38: #{self_expression.1} parent=35 // loop_header
                %s149 = sphi 0, %s153
                %p150 = scmp.ge.s32.totalorder %s149, 1
                %s154 = sphi %s139, %s139
                %s155 = sphi %s137, %s137
              $region39: #{self_expression.1} parent=35 // loop_header_branch
                %152 = sbr.rel (%p150) target = $region43
              $region40: #{self_expression.1} parent=35 // loop_body
                %v156 = vld [vmem:[%s154] sm:%s147]
                %157 = vst [vmem:[%s155] sm:%s147] %v156
                %v158 = vld [vmem:[%s154 + $0x8] sm:%s147]
                %159 = vst [vmem:[%s155 + $0x4] sm:%s147] %v158
                %v160 = vld [vmem:[%s154 + $0x10] sm:%s147]
                %161 = vst [vmem:[%s155 + $0x8] sm:%s147] %v160
                %v162 = vld [vmem:[%s154 + $0x18] sm:%s147]
                %163 = vst [vmem:[%s155 + $0xc] sm:%s147] %v162
                %v164 = vld [vmem:[%s154 + $0x20] sm:%s147]
                %165 = vst [vmem:[%s155 + $0x10] sm:%s147] %v164
                %v166 = vld [vmem:[%s154 + $0x28] sm:%s147]
                %167 = vst [vmem:[%s155 + $0x14] sm:%s147] %v166
                %v168 = vld [vmem:[%s154 + $0x30] sm:%s147]
                %169 = vst [vmem:[%s155 + $0x18] sm:%s147] %v168
                %v170 = vld [vmem:[%s154 + $0x38] sm:%s147]
                %171 = vst [vmem:[%s155 + $0x1c] sm:%s147] %v170
                %v172 = vld [vmem:[%s154 + $0x40] sm:%s147]
                %173 = vst [vmem:[%s155 + $0x20] sm:%s147] %v172
                %v174 = vld [vmem:[%s154 + $0x48] sm:%s147]
                %175 = vst [vmem:[%s155 + $0x24] sm:%s147] %v174
                %v176 = vld [vmem:[%s154 + $0x50] sm:%s147]
                %177 = vst [vmem:[%s155 + $0x28] sm:%s147] %v176
                %v178 = vld [vmem:[%s154 + $0x58] sm:%s147]
                %179 = vst [vmem:[%s155 + $0x2c] sm:%s147] %v178
                %v180 = vld [vmem:[%s154 + $0x60] sm:%s147]
                %181 = vst [vmem:[%s155 + $0x30] sm:%s147] %v180
                %v182 = vld [vmem:[%s154 + $0x68] sm:%s147]
                %183 = vst [vmem:[%s155 + $0x34] sm:%s147] %v182
                %v184 = vld [vmem:[%s154 + $0x70] sm:%s147]
                %185 = vst [vmem:[%s155 + $0x38] sm:%s147] %v184
                %v186 = vld [vmem:[%s154 + $0x78] sm:%s147]
                %187 = vst [vmem:[%s155 + $0x3c] sm:%s147] %v186
              $region41: #{self_expression.1} parent=35 // loop_footer
                %s153 = sadd.s32 1, %s149
              $region42: #{self_expression.1} parent=35 // loop_footer_branch
                %148 = sbr.rel target = $region38
              $region43: #{self_expression.1} parent=35 // loop_exit
                _
            $region36: #{self_expression.1} parent=27 // pred_fallthru
              _
          $region28: #{self_expression.1} parent=23 // pred_fallthru
            _
          %240 = vnop
        $region24: #{self_expression.1} parent=19 // pred_fallthru
          _
      $region20: #{self_expression.1} parent=5 // pred_fallthru
        _
      %p241 = scmp.le.s32.totalorder 1, %s11
      %p242 = scmp.lt.s32.totalorder %s11, 3
      %p243 = pnand %p241, %p242
      %p244 = pneg %p243
      // Predicated region
      $region62: #{self_expression.1} parent=5 // pred_check
        _
      $region63: #{self_expression.1} parent=5 // pred_check_branch
        %246 = sbr.rel (%p243) target = $region65
      $region64: #{self_expression.1} parent=5 // pred_region
        %s247 = ssub.s32 %s11, 1
        %s248 = sand.u32 %s62, 1
        %s249 = sand.u32 %s62, 1
        %s250 = smul.addr %s249, 64
        %s251 = scalar_lea.vmem [#allocation2], %s250
        // Predicated region
        $region66: #{self_expression.1} parent=64 // pred_check
          %p252 = pneg %p75
        $region67: #{self_expression.1} parent=64 // pred_check_branch
          %254 = sbr.rel (%p252) target = $region69
        $region68: #{self_expression.1} parent=64 // pred_region
          _
        $region69: #{self_expression.1} parent=64 // pred_fallthru
          _
        %s255 = smul.u32 16, %s20
        %p256 = scmp.lt.s32.totalorder %s255, 15
        %s257 = scalar_select %p256, %s255, 15
        %s258 = smul.addr %s257, 4
        %s259 = scalar_lea.vmem %s0, %s258
        %p260 = pneg %p49
        %p261 = pneg %p46
        %s262 = sand.u32 %s62, 1
        %s263 = sand.u32 %s62, 1
        %s264 = smul.addr %s263, 64
        %s265 = scalar_lea.vmem [#allocation2], %s264
        %p266 = pneg %p75
        %p267 = pneg %p72
        %p268 = pneg %p103
        %p269 = pneg %p100
        %s270 = sand.u32 %s90, 1
        %s271 = scalar_lea.sflag [#allocation4], %s270
        %s272 = sand.u32 %s90, 1
        %s273 = smul.addr %s272, 128
        %s274 = scalar_lea.vmem [#allocation3], %s273
        %s275 = smul.u32 16, %s20
        %p276 = scmp.lt.s32.totalorder %s275, 15
        %s277 = scalar_select %p276, %s275, 15
        %s278 = smul.addr %s277, 4
        %s279 = scalar_lea.vmem %s0, %s278
        %s280 = smul.u32 16, %s20
        %s281 = smul.u32 16, %s20
        %v283 = vld [vmem:[%s279] sm:$0xf]
        %v284 = vld [vmem:[%s279 + $0x4] sm:$0xf]
        %v285 = vld [vmem:[%s279 + $0x8] sm:$0xf]
        %v286 = vld [vmem:[%s279 + $0xc] sm:$0xf]
        %v287 = vld [vmem:[%s279 + $0x10] sm:$0xf]
        %v288 = vld [vmem:[%s279 + $0x14] sm:$0xf]
        %v289 = vld [vmem:[%s279 + $0x18] sm:$0xf]
        %v290 = vld [vmem:[%s279 + $0x1c] sm:$0xf]
        %v291 = vld [vmem:[%s279 + $0x20] sm:$0xf]
        %v292 = vld [vmem:[%s279 + $0x24] sm:$0xf]
        %v293 = vld [vmem:[%s279 + $0x28] sm:$0xf]
        %v294 = vld [vmem:[%s279 + $0x2c] sm:$0xf]
        %v295 = vld [vmem:[%s279 + $0x30] sm:$0xf]
        %v296 = vld [vmem:[%s279 + $0x34] sm:$0xf]
        %v297 = vld [vmem:[%s279 + $0x38] sm:$0xf]
        %v298 = vld [vmem:[%s279 + $0x3c] sm:$0xf]
        %v299 = vld [vmem:[%s251] sm:$0xf]
        %v300 = vld [vmem:[%s251 + $0x4] sm:$0xf]
        %v301 = vld [vmem:[%s251 + $0x8] sm:$0xf]
        %v302 = vld [vmem:[%s251 + $0xc] sm:$0xf]
        %v303 = vld [vmem:[%s251 + $0x10] sm:$0xf]
        %v304 = vld [vmem:[%s251 + $0x14] sm:$0xf]
        %v305 = vld [vmem:[%s251 + $0x18] sm:$0xf]
        %v306 = vld [vmem:[%s251 + $0x1c] sm:$0xf]
        %v307 = vld [vmem:[%s251 + $0x20] sm:$0xf]
        %v308 = vld [vmem:[%s251 + $0x24] sm:$0xf]
        %v309 = vld [vmem:[%s251 + $0x28] sm:$0xf]
        %v310 = vld [vmem:[%s251 + $0x2c] sm:$0xf]
        %v311 = vld [vmem:[%s251 + $0x30] sm:$0xf]
        %v312 = vld [vmem:[%s251 + $0x34] sm:$0xf]
        %v313 = vld [vmem:[%s251 + $0x38] sm:$0xf]
        %v314 = vld [vmem:[%s251 + $0x3c] sm:$0xf]
        %v331 = vunpack.c.l.b16 %v283
        %v332 = vunpack.c.l.b16 %v284
        %v333 = vunpack.c.l.b16 %v285
        %v334 = vunpack.c.l.b16 %v286
        %v335 = vunpack.c.l.b16 %v287
        %v336 = vunpack.c.l.b16 %v288
        %v337 = vunpack.c.l.b16 %v289
        %v338 = vunpack.c.l.b16 %v290
        %v339 = vunpack.c.l.b16 %v291
        %v340 = vunpack.c.l.b16 %v292
        %v341 = vunpack.c.l.b16 %v293
        %v342 = vunpack.c.l.b16 %v294
        %v343 = vunpack.c.l.b16 %v295
        %v344 = vunpack.c.l.b16 %v296
        %v345 = vunpack.c.l.b16 %v297
        %v346 = vunpack.c.l.b16 %v298
        %v347 = vpack.c.b16 %v332, %v331
        %v348 = vpack.c.b16 %v334, %v333
        %v349 = vpack.c.b16 %v336, %v335
        %v350 = vpack.c.b16 %v338, %v337
        %v351 = vpack.c.b16 %v340, %v339
        %v352 = vpack.c.b16 %v342, %v341
        %v353 = vpack.c.b16 %v344, %v343
        %v354 = vpack.c.b16 %v346, %v345
        %v379 = vunpack.c.l.b16 %v299
        %v380 = vunpack.c.l.b16 %v300
        %v381 = vunpack.c.l.b16 %v301
        %v382 = vunpack.c.l.b16 %v302
        %v383 = vunpack.c.l.b16 %v303
        %v384 = vunpack.c.l.b16 %v304
        %v385 = vunpack.c.l.b16 %v305
        %v386 = vunpack.c.l.b16 %v306
        %v387 = vunpack.c.l.b16 %v307
        %v388 = vunpack.c.l.b16 %v308
        %v389 = vunpack.c.l.b16 %v309
        %v390 = vunpack.c.l.b16 %v310
        %v391 = vunpack.c.l.b16 %v311
        %v392 = vunpack.c.l.b16 %v312
        %v393 = vunpack.c.l.b16 %v313
        %v394 = vunpack.c.l.b16 %v314
        %v395 = vpack.c.b16 %v380, %v379
        %v396 = vpack.c.b16 %v382, %v381
        %v397 = vpack.c.b16 %v384, %v383
        %v398 = vpack.c.b16 %v386, %v385
        %v399 = vpack.c.b16 %v388, %v387
        %v400 = vpack.c.b16 %v390, %v389
        %v401 = vpack.c.b16 %v392, %v391
        %v402 = vpack.c.b16 %v394, %v393
        %411 = vmatprep.subr.bf16.mxu0 0
        %412 = vmatpush1.bf16.msra.mxu0 %v402
        %413 = vmatprep.subr.bf16.mxu0 0
        %414 = vmatpush1.bf16.msra.mxu0 %v401
        %415 = vmatprep.subr.bf16.mxu0 0
        %416 = vmatpush1.bf16.msra.mxu0 %v400
        %417 = vmatprep.subr.bf16.mxu0 0
        %418 = vmatpush1.bf16.msra.mxu0 %v399
        %419 = vmatprep.subr.bf16.mxu0 0
        %420 = vmatpush1.bf16.msra.mxu0 %v398
        %421 = vmatprep.subr.bf16.mxu0 0
        %422 = vmatpush1.bf16.msra.mxu0 %v397
        %423 = vmatprep.subr.bf16.mxu0 0
        %424 = vmatpush1.bf16.msra.mxu0 %v396
        %425 = vmatprep.subr.bf16.mxu0 0
        %426 = vmatpush1.bf16.msra.mxu0 %v395
        %427 = vmatprep.subr.bf16.mxu0 0
        %428 = vmatpush2.bf16.msra.mxu0 0
        %429 = vmatprep.subr.bf16.mxu0 0
        %430 = vmatpush2.bf16.msra.mxu0 0
        %431 = vmatprep.subr.bf16.mxu0 0
        %432 = vmatpush2.bf16.msra.mxu0 0
        %433 = vmatprep.subr.bf16.mxu0 0
        %434 = vmatpush2.bf16.msra.mxu0 0
        %435 = vmatprep.subr.bf16.mxu0 0
        %436 = vmatpush2.bf16.msra.mxu0 0
        %437 = vmatprep.subr.bf16.mxu0 0
        %438 = vmatpush2.bf16.msra.mxu0 0
        %439 = vmatprep.subr.bf16.mxu0 0
        %440 = vmatpush2.bf16.msra.mxu0 0
        %441 = vmatprep.subr.bf16.mxu0 0
        %442 = vmatpush2.bf16.msra.mxu0 0
        %443 = vmatprep.mubr.bf16.mxu0 0
        %444 = vmatmul.mubr.bf16.gmra.mxu0 %v347
        %v445 = vpop.f32.mrf.mxu0
        %v446 = vadd.f32 0.0, %v445
        %v447 = vpop.f32.mrf.mxu0
        %v448 = vpop.f32.mrf.mxu0
        %v449 = vadd.f32 0.0, %v448
        %v450 = vpop.f32.mrf.mxu0
        %451 = vmatprep.mubr.bf16.mxu0 0
        %452 = vmatmul.mubr.bf16.gmra.mxu0 %v348
        %v453 = vpop.f32.mrf.mxu0
        %v454 = vadd.f32 0.0, %v453
        %v455 = vpop.f32.mrf.mxu0
        %v456 = vpop.f32.mrf.mxu0
        %v457 = vadd.f32 0.0, %v456
        %v458 = vpop.f32.mrf.mxu0
        %459 = vmatprep.mubr.bf16.mxu0 0
        %460 = vmatmul.mubr.bf16.gmra.mxu0 %v349
        %v461 = vpop.f32.mrf.mxu0
        %v462 = vadd.f32 0.0, %v461
        %v463 = vpop.f32.mrf.mxu0
        %v464 = vpop.f32.mrf.mxu0
        %v465 = vadd.f32 0.0, %v464
        %v466 = vpop.f32.mrf.mxu0
        %467 = vmatprep.mubr.bf16.mxu0 0
        %468 = vmatmul.mubr.bf16.gmra.mxu0 %v350
        %v469 = vpop.f32.mrf.mxu0
        %v470 = vadd.f32 0.0, %v469
        %v471 = vpop.f32.mrf.mxu0
        %v472 = vpop.f32.mrf.mxu0
        %v473 = vadd.f32 0.0, %v472
        %v474 = vpop.f32.mrf.mxu0
        %475 = vmatprep.mubr.bf16.mxu0 0
        %476 = vmatmul.mubr.bf16.gmra.mxu0 %v351
        %v477 = vpop.f32.mrf.mxu0
        %v478 = vadd.f32 0.0, %v477
        %v479 = vpop.f32.mrf.mxu0
        %v480 = vpop.f32.mrf.mxu0
        %v481 = vadd.f32 0.0, %v480
        %v482 = vpop.f32.mrf.mxu0
        %483 = vmatprep.mubr.bf16.mxu0 0
        %484 = vmatmul.mubr.bf16.gmra.mxu0 %v352
        %v485 = vpop.f32.mrf.mxu0
        %v486 = vadd.f32 0.0, %v485
        %v487 = vpop.f32.mrf.mxu0
        %v488 = vpop.f32.mrf.mxu0
        %v489 = vadd.f32 0.0, %v488
        %v490 = vpop.f32.mrf.mxu0
        %491 = vmatprep.mubr.bf16.mxu0 0
        %492 = vmatmul.mubr.bf16.gmra.mxu0 %v353
        %v493 = vpop.f32.mrf.mxu0
        %v494 = vadd.f32 0.0, %v493
        %v495 = vpop.f32.mrf.mxu0
        %v496 = vpop.f32.mrf.mxu0
        %v497 = vadd.f32 0.0, %v496
        %v498 = vpop.f32.mrf.mxu0
        %499 = vmatprep.mubr.bf16.mxu0 0
        %500 = vmatmul.mubr.bf16.gmra.mxu0 %v354
        %v501 = vpop.f32.mrf.mxu0
        %v502 = vadd.f32 0.0, %v501
        %v503 = vpop.f32.mrf.mxu0
        %v504 = vpop.f32.mrf.mxu0
        %v505 = vadd.f32 0.0, %v504
        %v506 = vpop.f32.mrf.mxu0
        %507 = vdwg.mxu0
        %508 = vst [vmem:[%s274] sm:$0xff] %v446
        %509 = vst [vmem:[%s274 + $0x8] sm:$0xff] %v449
        %510 = vst [vmem:[%s274 + $0x10] sm:$0xff] %v454
        %511 = vst [vmem:[%s274 + $0x18] sm:$0xff] %v457
        %512 = vst [vmem:[%s274 + $0x20] sm:$0xff] %v462
        %513 = vst [vmem:[%s274 + $0x28] sm:$0xff] %v465
        %514 = vst [vmem:[%s274 + $0x30] sm:$0xff] %v470
        %515 = vst [vmem:[%s274 + $0x38] sm:$0xff] %v473
        %516 = vst [vmem:[%s274 + $0x40] sm:$0xff] %v478
        %517 = vst [vmem:[%s274 + $0x48] sm:$0xff] %v481
        %518 = vst [vmem:[%s274 + $0x50] sm:$0xff] %v486
        %519 = vst [vmem:[%s274 + $0x58] sm:$0xff] %v489
        %520 = vst [vmem:[%s274 + $0x60] sm:$0xff] %v494
        %521 = vst [vmem:[%s274 + $0x68] sm:$0xff] %v497
        %522 = vst [vmem:[%s274 + $0x70] sm:$0xff] %v502
        %523 = vst [vmem:[%s274 + $0x78] sm:$0xff] %v505
        %s524 = sand.u32 %s90, 1
        %s525 = scalar_lea.sflag [#allocation4], %s524
        %s526 = sand.u32 %s90, 1
        %s527 = smul.addr %s526, 128
        %s528 = scalar_lea.vmem [#allocation3], %s527
        // Predicated region
        $region70: #{self_expression.1} parent=64 // pred_check
          %p529 = pneg %p100
        $region71: #{self_expression.1} parent=64 // pred_check_branch
          %531 = sbr.rel (%p529) target = $region73
        $region72: #{self_expression.1} parent=64 // pred_region
          %s532 = smul.u32 16, %s20
          %s534 = ssub.s32 2048, 2048
          %535 = vsyncadd %s525, %s534
          %s536 = smul.addr %s532, 2
          %s537 = sadd.s32 %s21, %s536
          %s538 = smul.addr %s537, 128
          %s539 = scalar_lea.hbm %s2, %s538
          %s540 = sshll.u32 %s528, 4
          %s541 = int_to_ptr.vmem [resolvable:$true] %s540
          %546 = dma.vmem_to_hbm [thread:$0]  %s541, 2048, %s539, %s525, 128, 256, 8
        $region73: #{self_expression.1} parent=64 // pred_fallthru
          _
      $region65: #{self_expression.1} parent=5 // pred_fallthru
        _
      %p547 = scmp.le.s32.totalorder 2, %s11
      // Predicated region
      $region74: #{self_expression.1} parent=5 // pred_check
        %p548 = pneg %p547
      $region75: #{self_expression.1} parent=5 // pred_check_branch
        %550 = sbr.rel (%p548) target = $region77
      $region76: #{self_expression.1} parent=5 // pred_region
        %s551 = ssub.s32 %s11, 2
        // Predicated region
        $region78: #{self_expression.1} parent=76 // pred_check
          %p552 = pneg %p106
        $region79: #{self_expression.1} parent=76 // pred_check_branch
          %554 = sbr.rel (%p552) target = $region81
        $region80: #{self_expression.1} parent=76 // pred_region
          %s555 = sand.u32 %s91, 1
          %s556 = scalar_lea.sflag [#allocation4], %s555
          %s557 = sand.u32 %s91, 1
          %s558 = smul.addr %s557, 128
          %s559 = scalar_lea.vmem [#allocation3], %s558
          %560 = dma.done %s556, 2048
        $region81: #{self_expression.1} parent=76 // pred_fallthru
          _
      $region77: #{self_expression.1} parent=5 // pred_fallthru
        _
    $region6: #{self_expression.1} parent=1 // loop_footer
      %s15 = sadd.s32 1, %s11
    $region7: #{self_expression.1} parent=1 // loop_footer_branch
      %10 = sbr.rel target = $region3
    $region8: #{self_expression.1} parent=1 // loop_exit
      _
    %561 = vsyncpa [#allocation4], 1
    %s562 = scalar_lea.sflag [#allocation4], 1
    %563 = vsyncpa %s562, 1

</llo_original>
